<compile_context>
chip_gen: v5e
topology: v5e:2x2
jax: 0.10.0
libtpu: 0.0.40
codegen_flags: <defaults>
</compile_context>

<pallas_src>
import functools

import jax
import jax.numpy as jnp
from jax.experimental import pallas as pl
from jax.experimental.pallas import tpu as pltpu


def _mlp_kernel(x_ref, w1_ref, b1_ref, w2_ref, b2_ref, o_ref, *, matmul_dtype):
    # x_ref : (TM, IN)    streamed per grid step
    # w1_ref: (HID, IN)   resident (PyTorch Linear layout)
    # b1_ref: (HID, 1)    resident
    # w2_ref: (HID, 1)    resident (layer-2 weight as a column)
    # b2_ref: (1,)        SMEM scalar
    # o_ref : (1, TM)     lane-dense output row
    x = x_ref[...].astype(matmul_dtype)
    w1 = w1_ref[...].astype(matmul_dtype)

    # Layer 1 on the MXU, transposed: h = W1 @ x^T -> (HID, TM), f32 accumulate.
    h = jax.lax.dot_general(
        w1, x,
        dimension_numbers=(((1,), (1,)), ((), ())),
        preferred_element_type=jnp.float32,
    )
    h = jnp.maximum(h + b1_ref[...], 0.0)  # bias + ReLU (VPU, f32)

    # Layer 2 (out_dim == 1): VPU multiply + XLU sublane reduce -> (1, TM).
    y = jnp.sum(h * w2_ref[...], axis=0, keepdims=True) + b2_ref[0]
    o_ref[...] = jax.nn.sigmoid(y)  # Sigmoid (EUP), lane-dense store


def _choose_tile(batch, max_tile=1024):
    """Return (tm, padded_batch). Prefers lane-dense (multiple-of-128) tiles
    that divide the batch (no pad) and keep >= 2 grid steps (v7x dual-TC)."""
    if batch % 128 == 0:
        cands = [d for d in range(128, min(batch, max_tile) + 1, 128)
                 if batch % d == 0]
        two_step = [d for d in cands if batch // d >= 2]
        return (max(two_step) if two_step else max(cands)), batch
    # Rare fallback: one padded step (block extents then equal the array dims).
    # TODO(synk): replace the pad with an in-kernel iota row mask on the tail tile.
    padded = ((batch + 7) // 8) * 8
    return padded, padded


def mlp_forward(x, w1, b1, w2, b2, *, matmul_dtype=jnp.bfloat16, max_tile=1024):
    """x: (B, IN) f32.  w1: (HID, IN).  b1: (HID, 1).  w2: (HID, 1).  b2: (1,)."""
    batch, in_dim = x.shape
    hid = w1.shape[0]

    tm, bp = _choose_tile(batch, max_tile)
    if bp != batch:
        x = jnp.pad(x, ((0, bp - batch), (0, 0)))  # fallback path only
    grid = (bp // tm,)

    flops = 2 * bp * in_dim * hid + 2 * bp * hid
    bytes_accessed = 4 * (bp * in_dim + hid * in_dim + 2 * hid + 1 + bp)
    cost = pl.CostEstimate(
        flops=flops, transcendentals=bp, bytes_accessed=bytes_accessed
    )

    out = pl.pallas_call(
        functools.partial(_mlp_kernel, matmul_dtype=matmul_dtype),
        out_shape=jax.ShapeDtypeStruct((1, bp), jnp.float32),
        grid=grid,
        in_specs=[
            pl.BlockSpec((tm, in_dim), lambda i: (i, 0)),  # x: streamed tiles
            pl.BlockSpec(w1.shape, lambda i: (0, 0)),      # resident weights
            pl.BlockSpec(b1.shape, lambda i: (0, 0)),
            pl.BlockSpec(w2.shape, lambda i: (0, 0)),
            pl.BlockSpec(memory_space=pltpu.MemorySpace.SMEM),  # b2 scalar
        ],
        out_specs=pl.BlockSpec((1, tm), lambda i: (0, i)),  # lane-dense output
        compiler_params=pltpu.CompilerParams(
            dimension_semantics=("parallel",),
        ),
        cost_estimate=cost,
    )(x, w1, b1, w2, b2)

    return out.reshape(bp, 1)[:batch]


def init_params(key, input_size, hidden_size, output_size):
    # PyTorch nn.Linear-style init: uniform(+/- 1/sqrt(fan_in)).
    assert output_size == 1
    k1, k2, k3, k4 = jax.random.split(key, 4)
    bound1 = 1.0 / (input_size ** 0.5)
    bound2 = 1.0 / (hidden_size ** 0.5)
    w1 = jax.random.uniform(k1, (hidden_size, input_size), jnp.float32, -bound1, bound1)
    b1 = jax.random.uniform(k2, (hidden_size, 1), jnp.float32, -bound1, bound1)
    w2 = jax.random.uniform(k3, (hidden_size, 1), jnp.float32, -bound2, bound2)
    b2 = jax.random.uniform(k4, (1,), jnp.float32, -bound2, bound2)
    return w1, b1, w2, b2


if __name__ == "__main__":
    input_size = 32      # stands in for train_data.shape[2]
    hidden_size = 64     # hidden_sizes[0]
    output_size = 1
    T, B = 32, 8         # many small samples folded into one call (256 rows)

    key = jax.random.PRNGKey(0)
    kx, kp = jax.random.split(key)
    data = jax.random.normal(kx, (T, B, input_size), jnp.float32)
    x = data.reshape(T * B, input_size)

    w1, b1, w2, b2 = init_params(kp, input_size, hidden_size, output_size)

    # Default (bf16 MXU operands, f32 accumulate + f32 elementwise).
    out = mlp_forward(x, w1, b1, w2, b2)
    jax.block_until_ready(out)

    # Pure-JAX f32 reference (same math as the PyTorch module).
    h_ref = jnp.maximum(x @ w1.T + b1[:, 0][None, :], 0.0)
    ref = jax.nn.sigmoid(h_ref @ w2 + b2[None, :])

    assert out.shape == (T * B, output_size)
    # bf16 matmul path: looser tolerance vs. the f32 reference.
    assert jnp.allclose(out, ref, atol=2e-2, rtol=0), float(jnp.abs(out - ref).max())

    # f32 validation path: exact parity with the f32 module.
    out_f32 = mlp_forward(x, w1, b1, w2, b2, matmul_dtype=jnp.float32)
    jax.block_until_ready(out_f32)
    assert jnp.allclose(out_f32, ref, atol=1e-5, rtol=1e-5)

    print("KERNEL_OK")
</pallas_src>

<mosaic_0001>
module attributes {stable_mosaic.version = 11 : i64} {
  func.func @_mlp_kernel(%arg0: i32, %arg1: memref<128x32xf32, #tpu.memory_space<vmem>>, %arg2: memref<64x32xf32, #tpu.memory_space<vmem>>, %arg3: memref<64x1xf32, #tpu.memory_space<vmem>>, %arg4: memref<64x1xf32, #tpu.memory_space<vmem>>, %arg5: memref<1xf32, #tpu.memory_space<smem>>, %arg6: memref<1x128xf32, #tpu.memory_space<vmem>>) attributes {dimension_semantics = [#tpu.dimension_semantics<parallel>], iteration_bounds = array<i64: 2>, scalar_prefetch = 0 : i64, scratch_operands = 0 : i64, tpu.core_type = #tpu.core_type<tc>, window_params = [{transform_indices = @transform_0, window_bounds = array<i64: 128, 32>}, {pipeline_mode = #tpu.pipeline_mode<synchronous>, transform_indices = @transform_1, window_bounds = array<i64: 64, 32>}, {pipeline_mode = #tpu.pipeline_mode<synchronous>, transform_indices = @transform_2, window_bounds = array<i64: 64, 1>}, {pipeline_mode = #tpu.pipeline_mode<synchronous>, transform_indices = @transform_3, window_bounds = array<i64: 64, 1>}, {transform_indices = @transform_4, window_bounds = array<i64: 1>}, {transform_indices = @transform_5, window_bounds = array<i64: 1, 128>}]} {
    %c0 = arith.constant 0 : index
    %c0_0 = arith.constant 0 : index
    %0 = vector.load %arg1[%c0, %c0_0] : memref<128x32xf32, #tpu.memory_space<vmem>>, vector<128x32xf32>
    %1 = arith.truncf %0 : vector<128x32xf32> to vector<128x32xbf16>
    %c0_1 = arith.constant 0 : index
    %c0_2 = arith.constant 0 : index
    %2 = vector.load %arg2[%c0_1, %c0_2] : memref<64x32xf32, #tpu.memory_space<vmem>>, vector<64x32xf32>
    %3 = arith.truncf %2 : vector<64x32xf32> to vector<64x32xbf16>
    %cst = arith.constant dense<0.000000e+00> : vector<64x128xf32>
    %4 = tpu.matmul %3, %1, %cst {dimension_numbers = #tpu.dot_dimension_numbers<[1], [1], [0], [0], [0, 0, 1, 0], [], []>} : vector<64x32xbf16>, vector<128x32xbf16>, vector<64x128xf32> -> vector<64x128xf32>
    %c0_3 = arith.constant 0 : index
    %c0_4 = arith.constant 0 : index
    %5 = vector.load %arg3[%c0_3, %c0_4] : memref<64x1xf32, #tpu.memory_space<vmem>>, vector<64x1xf32>
    %6 = vector.broadcast %5 : vector<64x1xf32> to vector<64x128xf32>
    %7 = arith.addf %4, %6 : vector<64x128xf32>
    %cst_5 = arith.constant 0.000000e+00 : f32
    %8 = vector.broadcast %cst_5 : f32 to vector<64x128xf32>
    %9 = arith.maximumf %7, %8 : vector<64x128xf32>
    %c0_6 = arith.constant 0 : index
    %c0_7 = arith.constant 0 : index
    %10 = vector.load %arg4[%c0_6, %c0_7] : memref<64x1xf32, #tpu.memory_space<vmem>>, vector<64x1xf32>
    %11 = vector.broadcast %10 : vector<64x1xf32> to vector<64x128xf32>
    %12 = arith.mulf %9, %11 : vector<64x128xf32>
    %cst_8 = arith.constant dense<0.000000e+00> : vector<128xf32>
    %13 = vector.multi_reduction <add>, %12, %cst_8 [0] : vector<64x128xf32> to vector<128xf32>
    %14 = vector.shape_cast %13 : vector<128xf32> to vector<1x128xf32>
    %c0_9 = arith.constant 0 : index
    %15 = memref.load %arg5[%c0_9] : memref<1xf32, #tpu.memory_space<smem>>
    %16 = vector.broadcast %15 : f32 to vector<1x128xf32>
    %17 = arith.addf %14, %16 : vector<1x128xf32>
    %18 = arith.negf %17 : vector<1x128xf32>
    %19 = math.exp %18 : vector<1x128xf32>
    %cst_10 = arith.constant 1.000000e+00 : f32
    %20 = vector.broadcast %cst_10 : f32 to vector<1x128xf32>
    %21 = arith.addf %20, %19 : vector<1x128xf32>
    %22 = arith.divf %20, %21 : vector<1x128xf32>
    %c0_11 = arith.constant 0 : index
    %c0_12 = arith.constant 0 : index
    %23 = vector.load %arg6[%c0_11, %c0_12] : memref<1x128xf32, #tpu.memory_space<vmem>>, vector<1x128xf32>
    tpu.vector_store %arg6[%c0_11, %c0_12], %22 {strides = array<i32>} : memref<1x128xf32, #tpu.memory_space<vmem>>, vector<1x128xf32>,
    return
  }
  func.func @transform_0(%arg0: i32) -> (i32, i32) {
    %c0_i32 = arith.constant 0 : i32
    %c0_i32_0 = arith.constant 0 : i32
    return %arg0, %c0_i32 : i32, i32
  }
  func.func @transform_1(%arg0: i32) -> (i32, i32) {
    %c0_i32 = arith.constant 0 : i32
    %c0_i32_0 = arith.constant 0 : i32
    %c0_i32_1 = arith.constant 0 : i32
    return %c0_i32, %c0_i32_0 : i32, i32
  }
  func.func @transform_2(%arg0: i32) -> (i32, i32) {
    %c0_i32 = arith.constant 0 : i32
    %c0_i32_0 = arith.constant 0 : i32
    %c0_i32_1 = arith.constant 0 : i32
    return %c0_i32, %c0_i32_0 : i32, i32
  }
  func.func @transform_3(%arg0: i32) -> (i32, i32) {
    %c0_i32 = arith.constant 0 : i32
    %c0_i32_0 = arith.constant 0 : i32
    %c0_i32_1 = arith.constant 0 : i32
    return %c0_i32, %c0_i32_0 : i32, i32
  }
  func.func @transform_4(%arg0: i32) -> i32 {
    %c0_i32 = arith.constant 0 : i32
    %c0_i32_0 = arith.constant 0 : i32
    return %c0_i32 : i32
  }
  func.func @transform_5(%arg0: i32) -> (i32, i32) {
    %c0_i32 = arith.constant 0 : i32
    %c0_i32_0 = arith.constant 0 : i32
    return %c0_i32, %arg0 : i32, i32
  }
}

</mosaic_0001>

<llo_original>
// kernel: tpu_custom_call.1
$region0: #{tpu_custom_call.1}
  #allocation0 [shape = 'u32[]', space=smem, size = 0x4, offset = 0x4, fixed_abs, tag = 'smem constant byte address 0x4 - core index']
  #allocation1 [shape = 'u32[72,128]{1,0:T(1,128)}', space=vmem, size = 0x9000, scoped, tag = 'internal scratch']
  #allocation2 [shape = 'f32[1]{0:T(128)S(6)}', space=smem, size = 0x200, scoped, tag = 'scoped memory for tpu_custom_call.1']
  %s0 = inlined_call_operand.vmem [shape: f32[256,32], index: 0, kind: input, shape index: {}]
  %s1 = inlined_call_operand.vmem [shape: f32[64,32], index: 1, kind: input, shape index: {}]
  %s2 = inlined_call_operand.vmem [shape: f32[64,1], index: 2, kind: input, shape index: {}]
  %s3 = inlined_call_operand.vmem [shape: f32[64,1], index: 3, kind: input, shape index: {}]
  %s4 = inlined_call_operand.<no memory space> [shape: f32[1], index: 4, kind: input, shape index: {}]
  %s5 = inlined_call_operand.hbm [shape: f32[1,256], index: 5, kind: output, shape index: {}]
  %s6 = sld [smem:[#allocation0]]
  $region53: #{tpu_custom_call.1} parent=0
    _
  %s8 = ssub.s32 1, %s6
  %s9 = scalar_select 0, %s8, %s6
  %10 = sst [smem:[#allocation2]] %s4
  $region1: #{tpu_custom_call.1} parent=0
    #allocation3 [shape = 'u8[1024]{0}', space=vmem, size = 0x400, scoped, tag = 'output window, operand 0']
    #allocation4 [shape = 's32[2]{0}', space=sflag, size = 0x8, scoped, tag = 'scoped memory for tpu_custom_call.1']
    %11 = vsyncpa [#allocation4], 0
    %s12 = scalar_lea.sflag [#allocation4], 1
    %13 = vsyncpa %s12, 0
    loop: start=0, step=1, limit=4
    $region2: #{tpu_custom_call.1} parent=1 // loop_pre_header
      _
    $region3: #{tpu_custom_call.1} parent=1 // loop_header
      %s15 = sphi 0, %s19
      %p16 = scmp.ge.s32.totalorder %s15, 4
      %s25 = sphi 0, %s27
      %s28 = sphi 0, %s25
      %s29 = sphi 0, %s28
      %s45 = sphi 0, %s29
      %s49 = sphi 0, %s49
      %s51 = sphi 0, %s49
      %s52 = sphi 0, %s51
      %s66 = sphi 0, %s52
      %s70 = sphi 0, %s70
      %s72 = sphi 0, %s70
      %s73 = sphi 0, %s72
      %s87 = sphi 0, %s73
      %s91 = sphi 0, %s91
      %s93 = sphi 0, %s91
      %s94 = sphi 0, %s93
      %s108 = sphi 0, %s94
      %s112 = sphi 0, %s112
      %s114 = sphi 0, %s112
      %s115 = sphi 0, %s114
      %s129 = sphi 0, %s115
      %s135 = sphi 0, %s137
      %s138 = sphi 0, %s135
      %s139 = sphi 0, %s138
      %s155 = sphi 0, %s139
    $region4: #{tpu_custom_call.1} parent=1 // loop_header_branch
      %18 = sbr.rel (%p16) target = $region8
    $region5: #{tpu_custom_call.1} parent=1 // loop_body
      %s20 = ssub.s32 %s15, 1
      %s21 = ssub.s32 %s15, 2
      %s22 = sadd.s32 %s15, 1
      %s23 = ssub.s32 %s15, %s22
      %p24 = scmp.eq.s32.totalorder %s23, 0
      %s26 = sadd.s32 %s25, 1
      %s27 = scalar_select %p24, %s25, %s26
      %p30 = pneg %p24
      %p31 = scmp.eq.s32.totalorder %s15, 1
      %p32 = por %p30, %p31
      %p33 = scmp.ne.s32.totalorder %s25, %s28
      %p34 = scmp.eq.s32.totalorder %s15, 0
      %p35 = por %p33, %p34
      %p36 = scmp.ne.s32.totalorder %s25, %s28
      %p37 = scmp.eq.s32.totalorder %s20, 1
      %p38 = por %p36, %p37
      %p39 = scmp.ne.s32.totalorder %s28, %s29
      %p40 = scmp.eq.s32.totalorder %s20, 0
      %p41 = por %p39, %p40
      %p42 = scmp.ne.s32.totalorder %s28, %s29
      %p43 = scmp.eq.s32.totalorder %s21, 1
      %p44 = por %p42, %p43
      %p46 = scmp.ne.s32.totalorder %s29, %s45
      %p47 = scmp.eq.s32.totalorder %s21, 0
      %p48 = por %p46, %p47
      %s50 = sadd.s32 %s49, 1
      %p53 = scmp.eq.s32.totalorder %s15, 1
      %p54 = scmp.ne.s32.totalorder %s49, %s51
      %p55 = scmp.eq.s32.totalorder %s15, 0
      %p56 = por %p54, %p55
      %p57 = scmp.ne.s32.totalorder %s49, %s51
      %p58 = scmp.eq.s32.totalorder %s20, 1
      %p59 = por %p57, %p58
      %p60 = scmp.ne.s32.totalorder %s51, %s52
      %p61 = scmp.eq.s32.totalorder %s20, 0
      %p62 = por %p60, %p61
      %p63 = scmp.ne.s32.totalorder %s51, %s52
      %p64 = scmp.eq.s32.totalorder %s21, 1
      %p65 = por %p63, %p64
      %p67 = scmp.ne.s32.totalorder %s52, %s66
      %p68 = scmp.eq.s32.totalorder %s21, 0
      %p69 = por %p67, %p68
      %s71 = sadd.s32 %s70, 1
      %p74 = scmp.eq.s32.totalorder %s15, 1
      %p75 = scmp.ne.s32.totalorder %s70, %s72
      %p76 = scmp.eq.s32.totalorder %s15, 0
      %p77 = por %p75, %p76
      %p78 = scmp.ne.s32.totalorder %s70, %s72
      %p79 = scmp.eq.s32.totalorder %s20, 1
      %p80 = por %p78, %p79
      %p81 = scmp.ne.s32.totalorder %s72, %s73
      %p82 = scmp.eq.s32.totalorder %s20, 0
      %p83 = por %p81, %p82
      %p84 = scmp.ne.s32.totalorder %s72, %s73
      %p85 = scmp.eq.s32.totalorder %s21, 1
      %p86 = por %p84, %p85
      %p88 = scmp.ne.s32.totalorder %s73, %s87
      %p89 = scmp.eq.s32.totalorder %s21, 0
      %p90 = por %p88, %p89
      %s92 = sadd.s32 %s91, 1
      %p95 = scmp.eq.s32.totalorder %s15, 1
      %p96 = scmp.ne.s32.totalorder %s91, %s93
      %p97 = scmp.eq.s32.totalorder %s15, 0
      %p98 = por %p96, %p97
      %p99 = scmp.ne.s32.totalorder %s91, %s93
      %p100 = scmp.eq.s32.totalorder %s20, 1
      %p101 = por %p99, %p100
      %p102 = scmp.ne.s32.totalorder %s93, %s94
      %p103 = scmp.eq.s32.totalorder %s20, 0
      %p104 = por %p102, %p103
      %p105 = scmp.ne.s32.totalorder %s93, %s94
      %p106 = scmp.eq.s32.totalorder %s21, 1
      %p107 = por %p105, %p106
      %p109 = scmp.ne.s32.totalorder %s94, %s108
      %p110 = scmp.eq.s32.totalorder %s21, 0
      %p111 = por %p109, %p110
      %s113 = sadd.s32 %s112, 1
      %p116 = scmp.eq.s32.totalorder %s15, 1
      %p117 = scmp.ne.s32.totalorder %s112, %s114
      %p118 = scmp.eq.s32.totalorder %s15, 0
      %p119 = por %p117, %p118
      %p120 = scmp.ne.s32.totalorder %s112, %s114
      %p121 = scmp.eq.s32.totalorder %s20, 1
      %p122 = por %p120, %p121
      %p123 = scmp.ne.s32.totalorder %s114, %s115
      %p124 = scmp.eq.s32.totalorder %s20, 0
      %p125 = por %p123, %p124
      %p126 = scmp.ne.s32.totalorder %s114, %s115
      %p127 = scmp.eq.s32.totalorder %s21, 1
      %p128 = por %p126, %p127
      %p130 = scmp.ne.s32.totalorder %s115, %s129
      %p131 = scmp.eq.s32.totalorder %s21, 0
      %p132 = por %p130, %p131
      %s133 = ssub.s32 %s15, %s22
      %p134 = scmp.eq.s32.totalorder %s133, 0
      %s136 = sadd.s32 %s135, 1
      %s137 = scalar_select %p134, %s135, %s136
      %p140 = pneg %p134
      %p141 = scmp.eq.s32.totalorder %s15, 1
      %p142 = por %p140, %p141
      %p143 = scmp.ne.s32.totalorder %s135, %s138
      %p144 = scmp.eq.s32.totalorder %s15, 0
      %p145 = por %p143, %p144
      %p146 = scmp.ne.s32.totalorder %s135, %s138
      %p147 = scmp.eq.s32.totalorder %s20, 1
      %p148 = por %p146, %p147
      %p149 = scmp.ne.s32.totalorder %s138, %s139
      %p150 = scmp.eq.s32.totalorder %s20, 0
      %p151 = por %p149, %p150
      %p152 = scmp.ne.s32.totalorder %s138, %s139
      %p153 = scmp.eq.s32.totalorder %s21, 1
      %p154 = por %p152, %p153
      %p156 = scmp.ne.s32.totalorder %s139, %s155
      %p157 = scmp.eq.s32.totalorder %s21, 0
      %p158 = por %p156, %p157
      %p159 = scmp.le.s32.totalorder 1, %s15
      %p160 = scmp.lt.s32.totalorder %s15, 3
      %p161 = pnand %p159, %p160
      %p162 = pneg %p161
      // Predicated region
      $region9: #{tpu_custom_call.1} parent=5 // pred_check
        _
      $region10: #{tpu_custom_call.1} parent=5 // pred_check_branch
        %164 = sbr.rel (%p161) target = $region12
      $region11: #{tpu_custom_call.1} parent=5 // pred_region
        %s165 = ssub.s32 %s15, 1
        // Predicated region
        $region13: #{tpu_custom_call.1} parent=11 // pred_check
          %p166 = pneg %p62
        $region14: #{tpu_custom_call.1} parent=11 // pred_check_branch
          %168 = sbr.rel (%p166) target = $region16
        $region15: #{tpu_custom_call.1} parent=11 // pred_region
          _
        $region16: #{tpu_custom_call.1} parent=11 // pred_fallthru
          _
        // Predicated region
        $region17: #{tpu_custom_call.1} parent=11 // pred_check
          %p169 = pneg %p83
        $region18: #{tpu_custom_call.1} parent=11 // pred_check_branch
          %171 = sbr.rel (%p169) target = $region20
        $region19: #{tpu_custom_call.1} parent=11 // pred_region
          _
        $region20: #{tpu_custom_call.1} parent=11 // pred_fallthru
          _
        // Predicated region
        $region21: #{tpu_custom_call.1} parent=11 // pred_check
          %p172 = pneg %p104
        $region22: #{tpu_custom_call.1} parent=11 // pred_check_branch
          %174 = sbr.rel (%p172) target = $region24
        $region23: #{tpu_custom_call.1} parent=11 // pred_region
          _
        $region24: #{tpu_custom_call.1} parent=11 // pred_fallthru
          _
        // Predicated region
        $region25: #{tpu_custom_call.1} parent=11 // pred_check
          %p175 = pneg %p125
        $region26: #{tpu_custom_call.1} parent=11 // pred_check_branch
          %177 = sbr.rel (%p175) target = $region28
        $region27: #{tpu_custom_call.1} parent=11 // pred_region
          _
        $region28: #{tpu_custom_call.1} parent=11 // pred_fallthru
          _
      $region12: #{tpu_custom_call.1} parent=5 // pred_fallthru
        _
      %p178 = scmp.lt.s32.totalorder %s15, 2
      // Predicated region
      $region29: #{tpu_custom_call.1} parent=5 // pred_check
        %p179 = pneg %p178
      $region30: #{tpu_custom_call.1} parent=5 // pred_check_branch
        %181 = sbr.rel (%p179) target = $region32
      $region31: #{tpu_custom_call.1} parent=5 // pred_region
        // Predicated region
        $region33: #{tpu_custom_call.1} parent=31 // pred_check
          %p182 = pneg %p35
        $region34: #{tpu_custom_call.1} parent=31 // pred_check_branch
          %184 = sbr.rel (%p182) target = $region36
        $region35: #{tpu_custom_call.1} parent=31 // pred_region
          %s185 = smul.u32 16, %s15
          %p186 = scmp.lt.s32.totalorder %s185, 31
          %s187 = scalar_select %p186, %s185, 31
          %s188 = smul.addr %s187, 8
          %s189 = scalar_lea.vmem %s0, %s188
          %s190 = smul.u32 16, %s15
        $region36: #{tpu_custom_call.1} parent=31 // pred_fallthru
          _
      $region32: #{tpu_custom_call.1} parent=5 // pred_fallthru
        _
      %p191 = scmp.le.s32.totalorder 1, %s15
      %p192 = scmp.lt.s32.totalorder %s15, 3
      %p193 = pnand %p191, %p192
      %p194 = pneg %p193
      // Predicated region
      $region37: #{tpu_custom_call.1} parent=5 // pred_check
        _
      $region38: #{tpu_custom_call.1} parent=5 // pred_check_branch
        %196 = sbr.rel (%p193) target = $region40
      $region39: #{tpu_custom_call.1} parent=5 // pred_region
        %s197 = ssub.s32 %s15, 1
        %s198 = smul.u32 16, %s20
        %p199 = scmp.lt.s32.totalorder %s198, 31
        %s200 = scalar_select %p199, %s198, 31
        %s201 = smul.addr %s200, 8
        %s202 = scalar_lea.vmem %s0, %s201
        %p203 = pneg %p41
        %p204 = pneg %p38
        %p205 = pneg %p62
        %p206 = pneg %p59
        %p207 = pneg %p83
        %p208 = pneg %p80
        %p209 = pneg %p104
        %p210 = pneg %p101
        %p211 = pneg %p125
        %p212 = pneg %p122
        %p213 = pneg %p151
        %p214 = pneg %p148
        %s215 = sand.u32 %s138, 1
        %s216 = scalar_lea.sflag [#allocation4], %s215
        %s217 = sand.u32 %s138, 1
        %s218 = scalar_lea.vmem [#allocation3], %s217
        %s219 = smul.u32 16, %s20
        %p220 = scmp.lt.s32.totalorder %s219, 31
        %s221 = scalar_select %p220, %s219, 31
        %s222 = smul.addr %s221, 8
        %s223 = scalar_lea.vmem %s0, %s222
        %s224 = smul.u32 16, %s20
        %v225 = vld [vmem:[%s223] sm:$0xff]
        %v226 = vld [vmem:[%s223 + $0x8] sm:$0xff]
        %v227 = vld [vmem:[%s223 + $0x10] sm:$0xff]
        %v228 = vld [vmem:[%s223 + $0x18] sm:$0xff]
        %v229 = vld [vmem:[%s223 + $0x20] sm:$0xff]
        %v230 = vld [vmem:[%s223 + $0x28] sm:$0xff]
        %v231 = vld [vmem:[%s223 + $0x30] sm:$0xff]
        %v232 = vld [vmem:[%s223 + $0x38] sm:$0xff]
        %v233 = vld [vmem:[%s223 + $0x40] sm:$0xff]
        %v234 = vld [vmem:[%s223 + $0x48] sm:$0xff]
        %v235 = vld [vmem:[%s223 + $0x50] sm:$0xff]
        %v236 = vld [vmem:[%s223 + $0x58] sm:$0xff]
        %v237 = vld [vmem:[%s223 + $0x60] sm:$0xff]
        %v238 = vld [vmem:[%s223 + $0x68] sm:$0xff]
        %v239 = vld [vmem:[%s223 + $0x70] sm:$0xff]
        %v240 = vld [vmem:[%s223 + $0x78] sm:$0xff]
        %v241 = vpack.c.bf16 %v226, %v225
        %v242 = vpack.c.bf16 %v228, %v227
        %v243 = vpack.c.bf16 %v230, %v229
        %v244 = vpack.c.bf16 %v232, %v231
        %v245 = vpack.c.bf16 %v234, %v233
        %v246 = vpack.c.bf16 %v236, %v235
        %v247 = vpack.c.bf16 %v238, %v237
        %v248 = vpack.c.bf16 %v240, %v239
        %v249 = vld [vmem:[%s1] sm:$0xff]
        %v250 = vld [vmem:[%s1 + $0x8] sm:$0xff]
        %v251 = vld [vmem:[%s1 + $0x10] sm:$0xff]
        %v252 = vld [vmem:[%s1 + $0x18] sm:$0xff]
        %v253 = vld [vmem:[%s1 + $0x20] sm:$0xff]
        %v254 = vld [vmem:[%s1 + $0x28] sm:$0xff]
        %v255 = vld [vmem:[%s1 + $0x30] sm:$0xff]
        %v256 = vld [vmem:[%s1 + $0x38] sm:$0xff]
        %v257 = vpack.c.bf16 %v250, %v249
        %v258 = vpack.c.bf16 %v252, %v251
        %v259 = vpack.c.bf16 %v254, %v253
        %v260 = vpack.c.bf16 %v256, %v255
        %v261 = vld [vmem:[%s2] sm:$0xff]
        %v262 = vld [vmem:[%s2 + $0x8] sm:$0xff]
        %v263 = vld [vmem:[%s2 + $0x10] sm:$0xff]
        %v264 = vld [vmem:[%s2 + $0x18] sm:$0xff]
        %v265 = vld [vmem:[%s2 + $0x20] sm:$0xff]
        %v266 = vld [vmem:[%s2 + $0x28] sm:$0xff]
        %v267 = vld [vmem:[%s2 + $0x30] sm:$0xff]
        %v268 = vld [vmem:[%s2 + $0x38] sm:$0xff]
        %270 = vset.pattern.permute.xlu0 0
        %271 = vperm.xlu0 %270, %v261
        %v272 = vpop.permute.xlu0 %271
        %275 = vset.pattern.permute.xlu0 0
        %276 = vperm.xlu0 %275, %v262
        %v277 = vpop.permute.xlu0 %276
        %280 = vset.pattern.permute.xlu0 0
        %281 = vperm.xlu0 %280, %v263
        %v282 = vpop.permute.xlu0 %281
        %285 = vset.pattern.permute.xlu0 0
        %286 = vperm.xlu0 %285, %v264
        %v287 = vpop.permute.xlu0 %286
        %290 = vset.pattern.permute.xlu0 0
        %291 = vperm.xlu0 %290, %v265
        %v292 = vpop.permute.xlu0 %291
        %295 = vset.pattern.permute.xlu0 0
        %296 = vperm.xlu0 %295, %v266
        %v297 = vpop.permute.xlu0 %296
        %300 = vset.pattern.permute.xlu0 0
        %301 = vperm.xlu0 %300, %v267
        %v302 = vpop.permute.xlu0 %301
        %305 = vset.pattern.permute.xlu0 0
        %306 = vperm.xlu0 %305, %v268
        %v307 = vpop.permute.xlu0 %306
        %vm309 = vcmask 261120
        %v311 = vsel %vm309, %v257, 0
        %v314 = vsel %vm309, %v258, 0
        %v317 = vsel %vm309, %v259, 0
        %v320 = vsel %vm309, %v260, 0
        %v323 = vsel %vm309, %v241, 0
        %v326 = vsel %vm309, %v242, 0
        %v329 = vsel %vm309, %v243, 0
        %v332 = vsel %vm309, %v244, 0
        %v335 = vsel %vm309, %v245, 0
        %v338 = vsel %vm309, %v246, 0
        %v341 = vsel %vm309, %v247, 0
        %v344 = vsel %vm309, %v248, 0
        %346 = vmatpush.bf16.xpose.msra.mxu0 %v344
        %347 = vmatpush.bf16.xpose.msra.mxu0 %v341
        %348 = vmatpush.bf16.xpose.msra.mxu0 %v338
        %349 = vmatpush.bf16.xpose.msra.mxu0 %v335
        %350 = vmatpush.bf16.xpose.msra.mxu0 %v332
        %351 = vmatpush.bf16.xpose.msra.mxu0 %v329
        %352 = vmatpush.bf16.xpose.msra.mxu0 %v326
        %353 = vmatpush.bf16.xpose.msra.mxu0 %v323
        %354 = vmatmul.bf16.gmra.mxu0 %v311
        %v355 = vpop.f32.mrf.mxu0
        %v356 = vadd.f32 %v272, %v355
        %v357 = vpop.f32.mrf.mxu0
        %v358 = vadd.f32 %v277, %v357
        %359 = vmatmul.bf16.gmra.mxu0 %v314
        %v360 = vpop.f32.mrf.mxu0
        %v361 = vadd.f32 %v282, %v360
        %v362 = vpop.f32.mrf.mxu0
        %v363 = vadd.f32 %v287, %v362
        %364 = vmatmul.bf16.gmra.mxu0 %v317
        %v365 = vpop.f32.mrf.mxu0
        %v366 = vadd.f32 %v292, %v365
        %v367 = vpop.f32.mrf.mxu0
        %v368 = vadd.f32 %v297, %v367
        %369 = vmatmul.bf16.gmra.mxu0 %v320
        %v370 = vpop.f32.mrf.mxu0
        %v371 = vadd.f32 %v302, %v370
        %v372 = vpop.f32.mrf.mxu0
        %v373 = vadd.f32 %v307, %v372
        %374 = vdwg.mxu0
        %v375 = vmax.f32 %v356, 0.0
        %v376 = vmax.f32 %v358, 0.0
        %v377 = vmax.f32 %v361, 0.0
        %v378 = vmax.f32 %v363, 0.0
        %v379 = vmax.f32 %v366, 0.0
        %v380 = vmax.f32 %v368, 0.0
        %v381 = vmax.f32 %v371, 0.0
        %v382 = vmax.f32 %v373, 0.0
        %v383 = vld [vmem:[%s3] sm:$0xff]
        %v384 = vld [vmem:[%s3 + $0x8] sm:$0xff]
        %v385 = vld [vmem:[%s3 + $0x10] sm:$0xff]
        %v386 = vld [vmem:[%s3 + $0x18] sm:$0xff]
        %v387 = vld [vmem:[%s3 + $0x20] sm:$0xff]
        %v388 = vld [vmem:[%s3 + $0x28] sm:$0xff]
        %v389 = vld [vmem:[%s3 + $0x30] sm:$0xff]
        %v390 = vld [vmem:[%s3 + $0x38] sm:$0xff]
        %392 = vset.pattern.permute.xlu0 0
        %393 = vperm.xlu0 %392, %v383
        %v394 = vpop.permute.xlu0 %393
        %397 = vset.pattern.permute.xlu0 0
        %398 = vperm.xlu0 %397, %v384
        %v399 = vpop.permute.xlu0 %398
        %402 = vset.pattern.permute.xlu0 0
        %403 = vperm.xlu0 %402, %v385
        %v404 = vpop.permute.xlu0 %403
        %407 = vset.pattern.permute.xlu0 0
        %408 = vperm.xlu0 %407, %v386
        %v409 = vpop.permute.xlu0 %408
        %412 = vset.pattern.permute.xlu0 0
        %413 = vperm.xlu0 %412, %v387
        %v414 = vpop.permute.xlu0 %413
        %417 = vset.pattern.permute.xlu0 0
        %418 = vperm.xlu0 %417, %v388
        %v419 = vpop.permute.xlu0 %418
        %422 = vset.pattern.permute.xlu0 0
        %423 = vperm.xlu0 %422, %v389
        %v424 = vpop.permute.xlu0 %423
        %427 = vset.pattern.permute.xlu0 0
        %428 = vperm.xlu0 %427, %v390
        %v429 = vpop.permute.xlu0 %428
        %v431 = vmul.f32 %v375, %v394
        %v432 = vmul.f32 %v376, %v399
        %v433 = vmul.f32 %v377, %v404
        %v434 = vmul.f32 %v378, %v409
        %v435 = vmul.f32 %v379, %v414
        %v436 = vmul.f32 %v380, %v419
        %v437 = vmul.f32 %v381, %v424
        %v438 = vmul.f32 %v382, %v429
        %v439 = vadd.f32 %v431, %v432
        %v440 = vadd.f32 %v439, %v433
        %v441 = vadd.f32 %v440, %v434
        %v442 = vadd.f32 %v441, %v435
        %v443 = vadd.f32 %v442, %v436
        %v444 = vadd.f32 %v443, %v437
        %v445 = vadd.f32 %v444, %v438
        %v446 = vrot.slane %v445, 4
        %v447 = vadd.f32 %v445, %v446
        %v448 = vrot.slane %v447, 2
        %v449 = vadd.f32 %v447, %v448
        %v450 = vrot.slane %v449, 1
        %v451 = vadd.f32 %v449, %v450
        %s452 = sld [smem:[#allocation2]]
        %v453 = vstv %s452
        %v454 = vadd.f32 %v451, %v453
        %v455 = vxor.u32 %v454, 2147483648
        %v456 = vmul.f32 %v455, 1.442695
        %v457 = vpow.pop %v456
        %v458 = vadd.f32 %v457, 1.0
        %v459 = vrcp.pop %v458
        %v460 = vmul.f32 %v458, %v459
        %v461 = vsub.f32 1.0, %v460
        %v462 = vmul.f32 %v459, %v461
        %v463 = vadd.f32 %v459, %v462
        %vm464 = vweird.f32 %v458
        %vm465 = vweird.f32 %v459
        %vm466 = vmor %vm464, %vm465
        %v467 = vsel %vm466, %v459, %v463
        %v468 = vand.u32 2147483647, %v458
        %vm469 = vcmp.eq.f32.partialorder %v468, 8.507059e+37
        %v470 = vand.u32 %v458, 2147483648
        %v471 = vor.u32 1.1754944e-38, %v470
        %v472 = vsel %vm469, %v471, %v467
        %v473 = vmul.f32 1.0, %v472
        %474 = vst [vmem:[%s218] sm:$0x1] %v473
        %s475 = sand.u32 %s138, 1
        %s476 = scalar_lea.sflag [#allocation4], %s475
        %s477 = sand.u32 %s138, 1
        %s478 = scalar_lea.vmem [#allocation3], %s477
        // Predicated region
        $region41: #{tpu_custom_call.1} parent=39 // pred_check
          %p479 = pneg %p148
        $region42: #{tpu_custom_call.1} parent=39 // pred_check_branch
          %481 = sbr.rel (%p479) target = $region44
        $region43: #{tpu_custom_call.1} parent=39 // pred_region
          %483 = vsyncadd %s476, 0
          %s484 = scalar_lea.hbm %s5, %s20
          %s486 = sshll.u32 %s478, 4
          %s487 = int_to_ptr.vmem [resolvable:$true] %s486
          %s488 = sshll.u32 %s484, 4
          %s489 = int_to_ptr.hbm [resolvable:$true] %s488
          %491 = dma.vmem_to_hbm [thread:$0]  %s487, 16, %s489, %s476
        $region44: #{tpu_custom_call.1} parent=39 // pred_fallthru
          _
      $region40: #{tpu_custom_call.1} parent=5 // pred_fallthru
        _
      %p492 = scmp.le.s32.totalorder 2, %s15
      // Predicated region
      $region45: #{tpu_custom_call.1} parent=5 // pred_check
        %p493 = pneg %p492
      $region46: #{tpu_custom_call.1} parent=5 // pred_check_branch
        %495 = sbr.rel (%p493) target = $region48
      $region47: #{tpu_custom_call.1} parent=5 // pred_region
        %s496 = ssub.s32 %s15, 2
        // Predicated region
        $region49: #{tpu_custom_call.1} parent=47 // pred_check
          %p497 = pneg %p154
        $region50: #{tpu_custom_call.1} parent=47 // pred_check_branch
          %499 = sbr.rel (%p497) target = $region52
        $region51: #{tpu_custom_call.1} parent=47 // pred_region
          %s500 = sand.u32 %s139, 1
          %s501 = scalar_lea.sflag [#allocation4], %s500
          %s502 = sand.u32 %s139, 1
          %s503 = scalar_lea.vmem [#allocation3], %s502
          %505 = dma.done %s501, 16
        $region52: #{tpu_custom_call.1} parent=47 // pred_fallthru
          _
      $region48: #{tpu_custom_call.1} parent=5 // pred_fallthru
        _
    $region6: #{tpu_custom_call.1} parent=1 // loop_footer
      %s19 = sadd.s32 1, %s15
    $region7: #{tpu_custom_call.1} parent=1 // loop_footer_branch
      %14 = sbr.rel target = $region3
    $region8: #{tpu_custom_call.1} parent=1 // loop_exit
      _
    %506 = vsyncpa [#allocation4], 1
    %s507 = scalar_lea.sflag [#allocation4], 1
    %508 = vsyncpa %s507, 1

</llo_original>
